<compile_context>
chip_gen: v6e
topology: v6e:2x2x1
jax: 0.10.0
libtpu: 0.0.40
codegen_flags: <defaults>
</compile_context>

<pallas_src>
import functools

import jax
import jax.numpy as jnp
from jax.experimental import pallas as pl
from jax.experimental.pallas import tpu as pltpu


def _round_up(x, m):
    return (x + m - 1) // m * m


def _vmem_budget_bytes():
    """~70% of per-core VMEM, generation-aware, with a conservative fallback."""
    cap = 64 * 1024 * 1024  # conservative default (v7x per-TC VMEM)
    try:
        info = pltpu.get_tpu_info()
        cap = int(getattr(info, "vmem_capacity_bytes", cap)) or cap
    except Exception:
        pass
    return min(int(cap * 0.7), 96 * 1024 * 1024)


# ----------------------------------------------------------------------------
# Fused decoder kernel.
# Grid = (M tiles [parallel], out-column tiles of the last layer [arbitrary]).
# Hidden layers computed once per M tile (j == 0) into a bf16 VMEM scratch;
# every j step does sigmoid(h @ W_out[:, j*tn:(j+1)*tn] + b_out[j*tn:(j+1)*tn]).
# ----------------------------------------------------------------------------
def _fused_mlp_kernel(*refs, num_hidden):
    x_ref = refs[0]
    o_ref = refs[-2]
    h_ref = refs[-1]                       # bf16 VMEM scratch (tm, hidden_last)
    layer_refs = refs[1:-2]                # (w0, b0, ..., w_out, b_out)
    j = pl.program_id(1)

    @pl.when(j == 0)
    def _():
        h = x_ref[...]                     # f32 (tm, z_dim)
        for li in range(num_hidden):
            w_ref = layer_refs[2 * li]
            b_ref = layer_refs[2 * li + 1]
            y = jnp.dot(h.astype(w_ref.dtype), w_ref[...],
                        preferred_element_type=jnp.float32)
            h = jnp.maximum(y + b_ref[...], 0.0)   # f32 epilogue
        h_ref[...] = h.astype(h_ref.dtype)

    w_out_ref = layer_refs[2 * num_hidden]
    b_out_ref = layer_refs[2 * num_hidden + 1]
    y = jnp.dot(h_ref[...], w_out_ref[...], preferred_element_type=jnp.float32)
    o_ref[...] = jax.nn.sigmoid(y + b_out_ref[...]).astype(o_ref.dtype)


def _fused_plan(M, z_dim, params, out_params, budget):
    """Pick (tm, tn_out) for the fused kernel, or None if it cannot fit VMEM."""
    w_out, _ = out_params
    hidden_last, out_dim_p = w_out.shape
    tm = min(256, _round_up(M, 8))

    def lane(n):
        return _round_up(max(n, 1), 128)

    def sub(n):
        return _round_up(max(n, 1), 8)

    fixed = 2 * tm * lane(z_dim) * 4                       # z tile (dbl-buffered)
    for w, _b in params:
        fixed += 2 * sub(w.shape[0]) * lane(w.shape[1]) * w.dtype.itemsize
        fixed += 2 * 8 * lane(w.shape[1]) * 4              # (1, fan_out) f32 bias
    fixed += tm * lane(hidden_last) * 2                    # bf16 hidden scratch

    q = out_dim_p // 128
    cands = sorted({128 * d for d in range(1, q + 1) if q % d == 0}, reverse=True)
    for tn in cands:
        stream = (2 * sub(hidden_last) * tn * w_out.dtype.itemsize   # W_out tile
                  + 2 * 8 * tn * 4                                    # b_out tile
                  + 2 * tm * tn * 4)                                  # out tile
        if fixed + stream <= budget:
            return tm, tn
    return None


def fused_mlp_decoder(z, params, out_params, tm, tn_out, vmem_limit):
    """Whole decoder MLP in one pallas_call. Returns (M, out_dim_padded) f32."""
    M, z_dim = z.shape
    w_out, b_out = out_params
    hidden_last, out_dim_p = w_out.shape
    num_hidden = len(params)

    Mp = _round_up(M, tm)
    zp = jnp.pad(z, ((0, Mp - M), (0, 0))) if Mp != M else z
    n_i = Mp // tm
    n_j = out_dim_p // tn_out

    inputs = [zp]
    in_specs = [pl.BlockSpec((tm, z_dim), lambda i, j: (i, 0))]
    flops = 0
    bytes_accessed = zp.size * zp.dtype.itemsize
    d_in = z_dim
    for w, b in params:
        d_out = w.shape[1]
        b2 = b.reshape(1, d_out)
        inputs += [w, b2]
        in_specs += [pl.BlockSpec(w.shape, lambda i, j: (0, 0)),
                     pl.BlockSpec(b2.shape, lambda i, j: (0, 0))]
        flops += 2 * Mp * d_in * d_out
        bytes_accessed += w.size * w.dtype.itemsize + d_out * 4
        d_in = d_out
    b_out2 = b_out.reshape(1, out_dim_p)
    inputs += [w_out, b_out2]
    in_specs += [pl.BlockSpec((hidden_last, tn_out), lambda i, j: (0, j)),
                 pl.BlockSpec((1, tn_out), lambda i, j: (0, j))]
    flops += 2 * Mp * d_in * out_dim_p
    bytes_accessed += n_i * (w_out.size * w_out.dtype.itemsize + out_dim_p * 4)
    bytes_accessed += Mp * out_dim_p * 4

    cost = pl.CostEstimate(flops=flops, transcendentals=Mp * out_dim_p,
                           bytes_accessed=bytes_accessed)
    out = pl.pallas_call(
        functools.partial(_fused_mlp_kernel, num_hidden=num_hidden),
        out_shape=jax.ShapeDtypeStruct((Mp, out_dim_p), jnp.float32),
        grid_spec=pltpu.PrefetchScalarGridSpec(
            num_scalar_prefetch=0,
            grid=(n_i, n_j),
            in_specs=in_specs,
            out_specs=pl.BlockSpec((tm, tn_out), lambda i, j: (i, j)),
            scratch_shapes=[pltpu.VMEM((tm, hidden_last), w_out.dtype)],
        ),
        compiler_params=pltpu.CompilerParams(
            dimension_semantics=("parallel", "arbitrary"),
            vmem_limit_bytes=int(vmem_limit),
        ),
        cost_estimate=cost,
    )(*inputs)
    return out[:M] if Mp != M else out


# ----------------------------------------------------------------------------
# Tiled per-layer fallback (layers too big to fuse): grid (M/tm, N/tn, K/tk),
# f32 accumulator scratch, reduction axis last/"arbitrary".
# ----------------------------------------------------------------------------
def _linear_act_tiled_kernel(x_ref, w_ref, b_ref, o_ref, acc_ref, *, activation):
    k = pl.program_id(2)

    @pl.when(k == 0)
    def _():
        acc_ref[...] = jnp.zeros_like(acc_ref)

    acc_ref[...] += jnp.dot(x_ref[...], w_ref[...],
                            preferred_element_type=jnp.float32)

    @pl.when(k == pl.num_programs(2) - 1)
    def _():
        y = acc_ref[...] + b_ref[...]
        if activation == "relu":
            y = jnp.maximum(y, 0.0)
        elif activation == "sigmoid":
            y = jax.nn.sigmoid(y)
        elif activation != "none":
            raise ValueError(activation)
        o_ref[...] = y.astype(o_ref.dtype)


def linear_act_tiled(x, w, b, activation, out_dtype=jnp.float32):
    """y = act(x @ w + b), tiled. Pads only when shapes are not tile-aligned."""
    M, K = x.shape
    K2, N = w.shape
    assert K == K2
    if x.dtype != w.dtype:
        x = x.astype(w.dtype)

    tm = min(512, _round_up(M, 8))
    tk = min(512, _round_up(K, 128))
    tn = min(512, _round_up(N, 128))
    Mp, Kp, Np = _round_up(M, tm), _round_up(K, tk), _round_up(N, tn)

    xp = jnp.pad(x, ((0, Mp - M), (0, Kp - K))) if (Mp, Kp) != (M, K) else x
    wp = jnp.pad(w, ((0, Kp - K), (0, Np - N))) if (Kp, Np) != (K, N) else w
    b2 = b.reshape(1, N).astype(jnp.float32)
    bp = jnp.pad(b2, ((0, 0), (0, Np - N))) if Np != N else b2

    grid = (Mp // tm, Np // tn, Kp // tk)
    itm = jnp.dtype(w.dtype).itemsize
    oitm = jnp.dtype(out_dtype).itemsize
    tile_bytes = (2 * (tm * tk * itm + tk * tn * itm + 8 * tn * 4 + tm * tn * oitm)
                  + tm * tn * 4)
    vmem_limit = min(_vmem_budget_bytes(),
                     max(16 * 1024 * 1024, 2 * tile_bytes + (8 << 20)))
    cost = pl.CostEstimate(
        flops=2 * Mp * Kp * Np,
        transcendentals=Mp * Np if activation == "sigmoid" else 0,
        bytes_accessed=(xp.size * itm + wp.size * itm + bp.size * 4
                        + Mp * Np * oitm))

    out = pl.pallas_call(
        functools.partial(_linear_act_tiled_kernel, activation=activation),
        out_shape=jax.ShapeDtypeStruct((Mp, Np), out_dtype),
        grid_spec=pltpu.PrefetchScalarGridSpec(
            num_scalar_prefetch=0,
            grid=grid,
            in_specs=[
                pl.BlockSpec((tm, tk), lambda i, j, k: (i, k)),
                pl.BlockSpec((tk, tn), lambda i, j, k: (k, j)),
                pl.BlockSpec((1, tn), lambda i, j, k: (0, j)),
            ],
            out_specs=pl.BlockSpec((tm, tn), lambda i, j, k: (i, j)),
            scratch_shapes=[pltpu.VMEM((tm, tn), jnp.float32)],
        ),
        compiler_params=pltpu.CompilerParams(
            dimension_semantics=("parallel", "parallel", "arbitrary"),
            vmem_limit_bytes=int(vmem_limit),
        ),
        cost_estimate=cost,
    )(xp, wp, bp)
    return out[:M, :N] if (Mp, Np) != (M, N) else out


# ----------------------------------------------------------------------------
# Parameter init (matches nn.Linear default U(-1/sqrt(in), 1/sqrt(in))).
# Hidden weights (in, out) bf16, biases f32. The output layer is padded to a
# multiple of 128 columns so the kernel's only HBM store is lane-dense.
# ----------------------------------------------------------------------------
def init_vae_decoder_params(key, hidden_sizes, z_dim, n_channels, n_rows, n_cols):
    out_dim = n_channels * n_rows * n_cols
    out_dim_p = _round_up(out_dim, 128)
    dims = [z_dim] + list(hidden_sizes)
    params = []
    for i in range(len(dims) - 1):
        fan_in, fan_out = dims[i], dims[i + 1]
        key, kw, kb = jax.random.split(key, 3)
        bound = 1.0 / jnp.sqrt(fan_in)
        w = jax.random.uniform(kw, (fan_in, fan_out), jnp.float32, -bound, bound)
        b = jax.random.uniform(kb, (fan_out,), jnp.float32, -bound, bound)
        params.append((w.astype(jnp.bfloat16), b))
    fan_in = dims[-1]
    key, kw, kb = jax.random.split(key, 3)
    bound = 1.0 / jnp.sqrt(fan_in)
    w_out = jax.random.uniform(kw, (fan_in, out_dim), jnp.float32, -bound, bound)
    b_out = jax.random.uniform(kb, (out_dim,), jnp.float32, -bound, bound)
    if out_dim_p != out_dim:
        w_out = jnp.pad(w_out, ((0, 0), (0, out_dim_p - out_dim)))
        b_out = jnp.pad(b_out, (0, out_dim_p - out_dim))
    return params, (w_out.astype(jnp.bfloat16), b_out)


def vae_decoder_forward(z, params, out_params, n_channels, n_rows, n_cols,
                        force_fallback=False):
    out_dim = n_channels * n_rows * n_cols
    budget = _vmem_budget_bytes()
    plan = None if force_fallback else _fused_plan(
        z.shape[0], z.shape[1], params, out_params, budget)
    if plan is not None:
        tm, tn_out = plan
        y = fused_mlp_decoder(z, params, out_params, tm, tn_out, budget)
    else:
        # Per-layer tiled path; bf16 intermediates halve inter-layer HBM bytes.
        h = z
        for w, b in params:
            h = linear_act_tiled(h, w, b, "relu", out_dtype=jnp.bfloat16)
        w_o, b_o = out_params
        y = linear_act_tiled(h, w_o, b_o, "sigmoid", out_dtype=jnp.float32)
    if y.shape[1] != out_dim:
        y = y[:, :out_dim]           # drop lane-padding columns
    # NCHW reshape exactly like torch .view(-1, C, H, W).
    return y.reshape(-1, n_channels, n_rows, n_cols)


def _ref_bf16(z, params, out_params, out_dim):
    """Plain-JAX reference with the same bf16-weight math."""
    h = z
    for w, b in params:
        h = jnp.maximum(
            jnp.dot(h.astype(jnp.bfloat16), w,
                    preferred_element_type=jnp.float32) + b, 0.0)
    w_o, b_o = out_params
    y = jax.nn.sigmoid(
        jnp.dot(h.astype(jnp.bfloat16), w_o,
                preferred_element_type=jnp.float32) + b_o)
    return y[:, :out_dim]


def _ref_f32(z, params, out_params, out_dim):
    """Pure-f32 reference (module semantics, up to bf16 weight storage)."""
    h = z
    for w, b in params:
        h = jnp.maximum(h @ w.astype(jnp.float32) + b, 0.0)
    w_o, b_o = out_params
    y = jax.nn.sigmoid(h @ w_o.astype(jnp.float32) + b_o)
    return y[:, :out_dim]


if __name__ == "__main__":
    key = jax.random.PRNGKey(0)
    key_p1, key_p2, key_z, key_t = jax.random.split(key, 4)

    # ---- Config 1: out_dim already a lane multiple (2*8*8 = 128) ----------
    batch, z_dim = 8, 16
    hidden_sizes = [32, 64]
    n_channels, n_rows, n_cols = 2, 8, 8
    out_dim = n_channels * n_rows * n_cols

    params, out_params = init_vae_decoder_params(
        key_p1, hidden_sizes, z_dim, n_channels, n_rows, n_cols)
    z = jax.random.normal(key_z, (batch, z_dim), jnp.float32)

    out = vae_decoder_forward(z, params, out_params, n_channels, n_rows, n_cols)
    out = jax.block_until_ready(out)
    assert out.shape == (batch, n_channels, n_rows, n_cols)
    assert jnp.all(jnp.isfinite(out))
    assert jnp.all((out >= 0.0) & (out <= 1.0))

    ref_bf = _ref_bf16(z, params, out_params, out_dim).reshape(out.shape)
    ref_32 = _ref_f32(z, params, out_params, out_dim).reshape(out.shape)
    assert jnp.allclose(out, ref_bf, atol=1e-4, rtol=1e-4)
    assert jnp.allclose(out, ref_32, atol=0.1)

    # Forced per-layer tiled fallback (bf16 intermediates) matches the fused path.
    out_fb = jax.block_until_ready(vae_decoder_forward(
        z, params, out_params, n_channels, n_rows, n_cols, force_fallback=True))
    assert out_fb.shape == out.shape
    assert jnp.allclose(out_fb, out, atol=1e-2)
    assert jnp.allclose(out_fb, ref_32, atol=0.1)

    # ---- Config 2: out_dim not a lane multiple (1*7*7 = 49 -> pad to 128) --
    nc2, nr2, ncol2 = 1, 7, 7
    params2, out_params2 = init_vae_decoder_params(
        key_p2, hidden_sizes, z_dim, nc2, nr2, ncol2)
    out2 = jax.block_until_ready(
        vae_decoder_forward(z, params2, out_params2, nc2, nr2, ncol2))
    assert out2.shape == (batch, nc2, nr2, ncol2)
    assert jnp.all((out2 >= 0.0) & (out2 <= 1.0))
    ref2_bf = _ref_bf16(z, params2, out_params2, nc2 * nr2 * ncol2).reshape(out2.shape)
    ref2_32 = _ref_f32(z, params2, out_params2, nc2 * nr2 * ncol2).reshape(out2.shape)
    assert jnp.allclose(out2, ref2_bf, atol=1e-4, rtol=1e-4)
    assert jnp.allclose(out2, ref2_32, atol=0.1)

    # ---- Standalone tiled-fallback kernel with ragged shapes + bf16 output --
    kx, kw, kb = jax.random.split(key_t, 3)
    xt = jax.random.normal(kx, (200, 300), jnp.float32)
    wt = jax.random.normal(kw, (300, 260), jnp.float32).astype(jnp.bfloat16)
    bt = jax.random.normal(kb, (260,), jnp.float32)
    out_t = jax.block_until_ready(
        linear_act_tiled(xt, wt, bt, "relu", out_dtype=jnp.bfloat16))
    ref_t = jnp.maximum(
        jnp.dot(xt.astype(jnp.bfloat16), wt,
                preferred_element_type=jnp.float32) + bt, 0.0)
    assert out_t.shape == ref_t.shape
    assert jnp.allclose(out_t.astype(jnp.float32), ref_t, atol=0.3, rtol=1e-2)

    print("KERNEL_OK")
</pallas_src>

<mosaic_0001>
module attributes {stable_mosaic.version = 11 : i64} {
  func.func @_fused_mlp_kernel(%arg0: i32, %arg1: i32, %arg2: memref<8x16xf32, #tpu.memory_space<vmem>>, %arg3: memref<16x32xbf16, #tpu.memory_space<vmem>>, %arg4: memref<1x32xf32, #tpu.memory_space<vmem>>, %arg5: memref<32x64xbf16, #tpu.memory_space<vmem>>, %arg6: memref<1x64xf32, #tpu.memory_space<vmem>>, %arg7: memref<64x128xbf16, #tpu.memory_space<vmem>>, %arg8: memref<1x128xf32, #tpu.memory_space<vmem>>, %arg9: memref<8x128xf32, #tpu.memory_space<vmem>>, %arg10: memref<8x64xbf16, #tpu.memory_space<vmem>>) attributes {dimension_semantics = [#tpu.dimension_semantics<parallel>, #tpu.dimension_semantics<arbitrary>], iteration_bounds = array<i64: 1, 1>, scalar_prefetch = 0 : i64, scratch_operands = 1 : i64, tpu.core_type = #tpu.core_type<tc>, window_params = [{transform_indices = @transform_0, window_bounds = array<i64: 8, 16>}, {pipeline_mode = #tpu.pipeline_mode<synchronous>, transform_indices = @transform_1, window_bounds = array<i64: 16, 32>}, {pipeline_mode = #tpu.pipeline_mode<synchronous>, transform_indices = @transform_2, window_bounds = array<i64: 1, 32>}, {pipeline_mode = #tpu.pipeline_mode<synchronous>, transform_indices = @transform_3, window_bounds = array<i64: 32, 64>}, {pipeline_mode = #tpu.pipeline_mode<synchronous>, transform_indices = @transform_4, window_bounds = array<i64: 1, 64>}, {transform_indices = @transform_5, window_bounds = array<i64: 64, 128>}, {transform_indices = @transform_6, window_bounds = array<i64: 1, 128>}, {transform_indices = @transform_7, window_bounds = array<i64: 8, 128>}]} {
    %c0_i32 = arith.constant 0 : i32
    %0 = arith.cmpi eq, %arg1, %c0_i32 : i32
    %1 = arith.extui %0 : i1 to i32
    %c0_i32_0 = arith.constant 0 : i32
    %2 = arith.cmpi ne, %1, %c0_i32_0 : i32
    scf.if %2 {
      %c0_9 = arith.constant 0 : index
      %c0_10 = arith.constant 0 : index
      %15 = vector.load %arg2[%c0_9, %c0_10] : memref<8x16xf32, #tpu.memory_space<vmem>>, vector<8x16xf32>
      %16 = arith.truncf %15 : vector<8x16xf32> to vector<8x16xbf16>
      %c0_11 = arith.constant 0 : index
      %c0_12 = arith.constant 0 : index
      %17 = vector.load %arg3[%c0_11, %c0_12] : memref<16x32xbf16, #tpu.memory_space<vmem>>, vector<16x32xbf16>
      %cst_13 = arith.constant dense<0.000000e+00> : vector<8x32xf32>
      %18 = tpu.matmul %16, %17, %cst_13 {dimension_numbers = #tpu.dot_dimension_numbers<[1], [0], [0], [1], [0, 0, 1, 1], [], []>} : vector<8x16xbf16>, vector<16x32xbf16>, vector<8x32xf32> -> vector<8x32xf32>
      %c0_14 = arith.constant 0 : index
      %c0_15 = arith.constant 0 : index
      %19 = vector.load %arg4[%c0_14, %c0_15] : memref<1x32xf32, #tpu.memory_space<vmem>>, vector<1x32xf32>
      %20 = vector.broadcast %19 : vector<1x32xf32> to vector<8x32xf32>
      %21 = arith.addf %18, %20 : vector<8x32xf32>
      %cst_16 = arith.constant 0.000000e+00 : f32
      %22 = vector.broadcast %cst_16 : f32 to vector<8x32xf32>
      %23 = arith.maximumf %21, %22 : vector<8x32xf32>
      %24 = arith.truncf %23 : vector<8x32xf32> to vector<8x32xbf16>
      %c0_17 = arith.constant 0 : index
      %c0_18 = arith.constant 0 : index
      %25 = vector.load %arg5[%c0_17, %c0_18] : memref<32x64xbf16, #tpu.memory_space<vmem>>, vector<32x64xbf16>
      %cst_19 = arith.constant dense<0.000000e+00> : vector<8x64xf32>
      %26 = tpu.matmul %24, %25, %cst_19 {dimension_numbers = #tpu.dot_dimension_numbers<[1], [0], [0], [1], [0, 0, 1, 1], [], []>} : vector<8x32xbf16>, vector<32x64xbf16>, vector<8x64xf32> -> vector<8x64xf32>
      %c0_20 = arith.constant 0 : index
      %c0_21 = arith.constant 0 : index
      %27 = vector.load %arg6[%c0_20, %c0_21] : memref<1x64xf32, #tpu.memory_space<vmem>>, vector<1x64xf32>
      %28 = vector.broadcast %27 : vector<1x64xf32> to vector<8x64xf32>
      %29 = arith.addf %26, %28 : vector<8x64xf32>
      %cst_22 = arith.constant 0.000000e+00 : f32
      %30 = vector.broadcast %cst_22 : f32 to vector<8x64xf32>
      %31 = arith.maximumf %29, %30 : vector<8x64xf32>
      %32 = arith.truncf %31 : vector<8x64xf32> to vector<8x64xbf16>
      %c0_23 = arith.constant 0 : index
      %c0_24 = arith.constant 0 : index
      %33 = vector.load %arg10[%c0_23, %c0_24] : memref<8x64xbf16, #tpu.memory_space<vmem>>, vector<8x64xbf16>
      tpu.vector_store %arg10[%c0_23, %c0_24], %32 {strides = array<i32>} : memref<8x64xbf16, #tpu.memory_space<vmem>>, vector<8x64xbf16>,
    } else {
    }
    %c0 = arith.constant 0 : index
    %c0_1 = arith.constant 0 : index
    %3 = vector.load %arg10[%c0, %c0_1] : memref<8x64xbf16, #tpu.memory_space<vmem>>, vector<8x64xbf16>
    %c0_2 = arith.constant 0 : index
    %c0_3 = arith.constant 0 : index
    %4 = vector.load %arg7[%c0_2, %c0_3] : memref<64x128xbf16, #tpu.memory_space<vmem>>, vector<64x128xbf16>
    %cst = arith.constant dense<0.000000e+00> : vector<8x128xf32>
    %5 = tpu.matmul %3, %4, %cst {dimension_numbers = #tpu.dot_dimension_numbers<[1], [0], [0], [1], [0, 0, 1, 1], [], []>} : vector<8x64xbf16>, vector<64x128xbf16>, vector<8x128xf32> -> vector<8x128xf32>
    %c0_4 = arith.constant 0 : index
    %c0_5 = arith.constant 0 : index
    %6 = vector.load %arg8[%c0_4, %c0_5] : memref<1x128xf32, #tpu.memory_space<vmem>>, vector<1x128xf32>
    %7 = vector.broadcast %6 : vector<1x128xf32> to vector<8x128xf32>
    %8 = arith.addf %5, %7 : vector<8x128xf32>
    %9 = arith.negf %8 : vector<8x128xf32>
    %10 = math.exp %9 : vector<8x128xf32>
    %cst_6 = arith.constant 1.000000e+00 : f32
    %11 = vector.broadcast %cst_6 : f32 to vector<8x128xf32>
    %12 = arith.addf %11, %10 : vector<8x128xf32>
    %13 = arith.divf %11, %12 : vector<8x128xf32>
    %c0_7 = arith.constant 0 : index
    %c0_8 = arith.constant 0 : index
    %14 = vector.load %arg9[%c0_7, %c0_8] : memref<8x128xf32, #tpu.memory_space<vmem>>, vector<8x128xf32>
    tpu.vector_store %arg9[%c0_7, %c0_8], %13 {strides = array<i32>} : memref<8x128xf32, #tpu.memory_space<vmem>>, vector<8x128xf32>,
    return
  }
  func.func @transform_0(%arg0: i32, %arg1: i32) -> (i32, i32) {
    %c0_i32 = arith.constant 0 : i32
    %c0_i32_0 = arith.constant 0 : i32
    return %arg0, %c0_i32 : i32, i32
  }
  func.func @transform_1(%arg0: i32, %arg1: i32) -> (i32, i32) {
    %c0_i32 = arith.constant 0 : i32
    %c0_i32_0 = arith.constant 0 : i32
    %c0_i32_1 = arith.constant 0 : i32
    return %c0_i32, %c0_i32_0 : i32, i32
  }
  func.func @transform_2(%arg0: i32, %arg1: i32) -> (i32, i32) {
    %c0_i32 = arith.constant 0 : i32
    %c0_i32_0 = arith.constant 0 : i32
    %c0_i32_1 = arith.constant 0 : i32
    return %c0_i32, %c0_i32_0 : i32, i32
  }
  func.func @transform_3(%arg0: i32, %arg1: i32) -> (i32, i32) {
    %c0_i32 = arith.constant 0 : i32
    %c0_i32_0 = arith.constant 0 : i32
    %c0_i32_1 = arith.constant 0 : i32
    return %c0_i32, %c0_i32_0 : i32, i32
  }
  func.func @transform_4(%arg0: i32, %arg1: i32) -> (i32, i32) {
    %c0_i32 = arith.constant 0 : i32
    %c0_i32_0 = arith.constant 0 : i32
    %c0_i32_1 = arith.constant 0 : i32
    return %c0_i32, %c0_i32_0 : i32, i32
  }
  func.func @transform_5(%arg0: i32, %arg1: i32) -> (i32, i32) {
    %c0_i32 = arith.constant 0 : i32
    %c0_i32_0 = arith.constant 0 : i32
    return %c0_i32, %arg1 : i32, i32
  }
  func.func @transform_6(%arg0: i32, %arg1: i32) -> (i32, i32) {
    %c0_i32 = arith.constant 0 : i32
    %c0_i32_0 = arith.constant 0 : i32
    return %c0_i32, %arg1 : i32, i32
  }
  func.func @transform_7(%arg0: i32, %arg1: i32) -> (i32, i32) {
    %c0_i32 = arith.constant 0 : i32
    return %arg0, %arg1 : i32, i32
  }
}

</mosaic_0001>

<llo_original>
// kernel: tpu_custom_call.1
$region0: #{tpu_custom_call.1}
  #allocation0 [shape = 'u32[]', space=smem, size = 0x4, offset = 0x4, fixed_abs, tag = 'smem constant byte address 0x4 - core index']
  #allocation1 [shape = 'u32[144,128]{1,0:T(1,128)}', space=vmem, size = 0x12000, scoped, tag = 'internal scratch']
  #allocation2 [shape = 'bf16[8,64]{1,0:T(8,128)(2,1)}', space=vmem, size = 0x800, scoped, tag = 'scratch operand']
  %s0 = inlined_call_operand.hbm [shape: f32[8,16], index: 0, kind: input, shape index: {}]
  %s1 = inlined_call_operand.hbm [shape: bf16[16,32], index: 1, kind: input, shape index: {}]
  %s2 = inlined_call_operand.vmem [shape: f32[1,32], index: 2, kind: input, shape index: {}]
  %s3 = inlined_call_operand.hbm [shape: bf16[32,64], index: 3, kind: input, shape index: {}]
  %s4 = inlined_call_operand.vmem [shape: f32[1,64], index: 4, kind: input, shape index: {}]
  %s5 = inlined_call_operand.hbm [shape: bf16[64,128], index: 5, kind: input, shape index: {}]
  %s6 = inlined_call_operand.vmem [shape: f32[1,128], index: 6, kind: input, shape index: {}]
  %s7 = inlined_call_operand.hbm [shape: f32[8,128], index: 7, kind: output, shape index: {}]
  %s8 = sld [smem:[#allocation0]]
  $region58: #{tpu_custom_call.1} parent=0
    _
  %s10 = ssub.s32 1, %s8
  %s11 = scalar_select 0, %s10, %s8
  $region1: #{tpu_custom_call.1} parent=0
    #allocation3 [shape = 'u8[4096]{0}', space=vmem, size = 0x1000, scoped, tag = 'input window, operand 0, single buffered']
    #allocation4 [shape = 's32[1]{0}', space=sflag, size = 0x4, scoped, tag = 'scoped memory for tpu_custom_call.1']
    #allocation5 [shape = 's32[1]{0}', space=sflag, size = 0x4, scoped, tag = 'scoped memory for tpu_custom_call.1']
    #allocation6 [shape = 'u8[4096]{0}', space=vmem, size = 0x1000, scoped, tag = 'input window, operand 1, single buffered']
    #allocation7 [shape = 's32[1]{0}', space=sflag, size = 0x4, scoped, tag = 'scoped memory for tpu_custom_call.1']
    #allocation8 [shape = 'u8[8192]{0}', space=vmem, size = 0x2000, scoped, tag = 'input window, operand 3, single buffered']
    #allocation9 [shape = 'u8[16384]{0}', space=vmem, size = 0x4000, scoped, tag = 'input window, operand 5, single buffered']
    #allocation10 [shape = 's32[1]{0}', space=sflag, size = 0x4, scoped, tag = 'scoped memory for tpu_custom_call.1']
    #allocation11 [shape = 'u8[4096]{0}', space=vmem, size = 0x1000, scoped, tag = 'output window, operand 0, single buffered']
    %12 = vsyncpa [#allocation4], 0
    %13 = vsyncpa [#allocation7], 0
    %14 = vsyncpa [#allocation10], 0
    %15 = vsyncpa [#allocation5], 0
    // Predicated region
    $region2: #{tpu_custom_call.1} parent=1 // pred_check
      _
    $region3: #{tpu_custom_call.1} parent=1 // pred_check_branch
      %17 = sbr.rel (0) target = $region5
    $region4: #{tpu_custom_call.1} parent=1 // pred_region
      %s19 = ssub.s32 128, 128
      %20 = vsyncadd [#allocation4], %s19
      %s22 = sshll.u32 [#allocation3], 4
      %s23 = int_to_ptr.vmem [resolvable:$true] %s22
      %25 = dma.hbm_to_vmem [thread:$0]  %s0, 128, %s23, [#allocation4]
    $region5: #{tpu_custom_call.1} parent=1 // pred_fallthru
      _
    // Predicated region
    $region6: #{tpu_custom_call.1} parent=1 // pred_check
      _
    $region7: #{tpu_custom_call.1} parent=1 // pred_check_branch
      %27 = sbr.rel (0) target = $region9
    $region8: #{tpu_custom_call.1} parent=1 // pred_region
      %s29 = ssub.s32 128, 128
      %30 = vsyncadd [#allocation7], %s29
      %s31 = sshll.u32 [#allocation6], 4
      %s32 = int_to_ptr.vmem [resolvable:$true] %s31
      %37 = dma.hbm_to_vmem [thread:$0]  %s1, 128, %s32, [#allocation7], 64, 64, 4
    $region9: #{tpu_custom_call.1} parent=1 // pred_fallthru
      _
    // Predicated region
    $region10: #{tpu_custom_call.1} parent=1 // pred_check
      _
    $region11: #{tpu_custom_call.1} parent=1 // pred_check_branch
      %39 = sbr.rel (0) target = $region13
    $region12: #{tpu_custom_call.1} parent=1 // pred_region
      _
    $region13: #{tpu_custom_call.1} parent=1 // pred_fallthru
      _
    // Predicated region
    $region14: #{tpu_custom_call.1} parent=1 // pred_check
      _
    $region15: #{tpu_custom_call.1} parent=1 // pred_check_branch
      %41 = sbr.rel (0) target = $region17
    $region16: #{tpu_custom_call.1} parent=1 // pred_region
      %s43 = ssub.s32 256, 256
      %44 = vsyncadd [#allocation7], %s43
      %s45 = sshll.u32 [#allocation8], 4
      %s46 = int_to_ptr.vmem [resolvable:$true] %s45
      %51 = dma.hbm_to_vmem [thread:$0]  %s3, 256, %s46, [#allocation7], 64, 64, 4
    $region17: #{tpu_custom_call.1} parent=1 // pred_fallthru
      _
    // Predicated region
    $region18: #{tpu_custom_call.1} parent=1 // pred_check
      _
    $region19: #{tpu_custom_call.1} parent=1 // pred_check_branch
      %53 = sbr.rel (0) target = $region21
    $region20: #{tpu_custom_call.1} parent=1 // pred_region
      _
    $region21: #{tpu_custom_call.1} parent=1 // pred_fallthru
      _
    // Predicated region
    $region22: #{tpu_custom_call.1} parent=1 // pred_check
      _
    $region23: #{tpu_custom_call.1} parent=1 // pred_check_branch
      %55 = sbr.rel (0) target = $region25
    $region24: #{tpu_custom_call.1} parent=1 // pred_region
      %s57 = ssub.s32 512, 512
      %58 = vsyncadd [#allocation10], %s57
      %s59 = sshll.u32 [#allocation9], 4
      %s60 = int_to_ptr.vmem [resolvable:$true] %s59
      %65 = dma.hbm_to_vmem [thread:$0]  %s5, 512, %s60, [#allocation10], 64, 64, 4
    $region25: #{tpu_custom_call.1} parent=1 // pred_fallthru
      _
    // Predicated region
    $region26: #{tpu_custom_call.1} parent=1 // pred_check
      _
    $region27: #{tpu_custom_call.1} parent=1 // pred_check_branch
      %67 = sbr.rel (0) target = $region29
    $region28: #{tpu_custom_call.1} parent=1 // pred_region
      _
    $region29: #{tpu_custom_call.1} parent=1 // pred_fallthru
      _
    // Predicated region
    $region30: #{tpu_custom_call.1} parent=1 // pred_check
      _
    $region31: #{tpu_custom_call.1} parent=1 // pred_check_branch
      %69 = sbr.rel (0) target = $region33
    $region32: #{tpu_custom_call.1} parent=1 // pred_region
      %70 = dma.done [#allocation4], 128
    $region33: #{tpu_custom_call.1} parent=1 // pred_fallthru
      _
    // Predicated region
    $region34: #{tpu_custom_call.1} parent=1 // pred_check
      _
    $region35: #{tpu_custom_call.1} parent=1 // pred_check_branch
      %72 = sbr.rel (0) target = $region37
    $region36: #{tpu_custom_call.1} parent=1 // pred_region
      %73 = dma.done [#allocation7], 128
    $region37: #{tpu_custom_call.1} parent=1 // pred_fallthru
      _
    // Predicated region
    $region38: #{tpu_custom_call.1} parent=1 // pred_check
      _
    $region39: #{tpu_custom_call.1} parent=1 // pred_check_branch
      %75 = sbr.rel (0) target = $region41
    $region40: #{tpu_custom_call.1} parent=1 // pred_region
      %76 = dma.done [#allocation7], 256
    $region41: #{tpu_custom_call.1} parent=1 // pred_fallthru
      _
    // Predicated region
    $region42: #{tpu_custom_call.1} parent=1 // pred_check
      _
    $region43: #{tpu_custom_call.1} parent=1 // pred_check_branch
      %78 = sbr.rel (0) target = $region45
    $region44: #{tpu_custom_call.1} parent=1 // pred_region
      %79 = dma.done [#allocation10], 512
    $region45: #{tpu_custom_call.1} parent=1 // pred_fallthru
      _
    %p81 = scmp.eq.s32.totalorder 0, 0
    // Predicated region
    $region46: #{tpu_custom_call.1} parent=1 // pred_check
      %p82 = pneg %p81
    $region47: #{tpu_custom_call.1} parent=1 // pred_check_branch
      %84 = sbr.rel (%p82) target = $region49
    $region48: #{tpu_custom_call.1} parent=1 // pred_region
      %v85 = vld [vmem:[#allocation3] sm:$0xff]
      %v86 = vpack.c.bf16 %v85, %v85
      %v87 = vld [vmem:[#allocation6] sm:$0xf]
      %v88 = vld [vmem:[#allocation6 + $0x4] sm:$0xf]
      %v89 = vld [vmem:[%s2] sm:$0x1]
      %v91 = vlaneseq
      %v92 = vshrl.u32 %v91, 7
      %v93 = vsub.s32 0, %v92
      %v94 = vrot.slane %v89, %v93
      %v98 = vunpack.c.l.b16 %v87
      %v99 = vunpack.c.l.b16 %v88
      %v100 = vpack.c.b16 %v99, %v98
      %vm102 = vcmask 130048
      %v104 = vsel %vm102, %v86, 0
      %106 = vmatprep.subr.bf16.mxu0 0
      %107 = vmatpush1.bf16.msra.mxu0 0
      %108 = vmatprep.subr.bf16.mxu0 0
      %109 = vmatpush1.bf16.msra.mxu0 0
      %110 = vmatprep.subr.bf16.mxu0 0
      %111 = vmatpush1.bf16.msra.mxu0 0
      %112 = vmatprep.subr.bf16.mxu0 0
      %113 = vmatpush1.bf16.msra.mxu0 0
      %114 = vmatprep.subr.bf16.mxu0 0
      %115 = vmatpush1.bf16.msra.mxu0 0
      %116 = vmatprep.subr.bf16.mxu0 0
      %117 = vmatpush1.bf16.msra.mxu0 0
      %118 = vmatprep.subr.bf16.mxu0 0
      %119 = vmatpush1.bf16.msra.mxu0 0
      %120 = vmatprep.subr.bf16.mxu0 0
      %121 = vmatpush1.bf16.msra.mxu0 %v100
      %122 = vmatprep.subr.bf16.mxu0 0
      %123 = vmatpush2.bf16.msra.mxu0 0
      %124 = vmatprep.subr.bf16.mxu0 0
      %125 = vmatpush2.bf16.msra.mxu0 0
      %126 = vmatprep.subr.bf16.mxu0 0
      %127 = vmatpush2.bf16.msra.mxu0 0
      %128 = vmatprep.subr.bf16.mxu0 0
      %129 = vmatpush2.bf16.msra.mxu0 0
      %130 = vmatprep.subr.bf16.mxu0 0
      %131 = vmatpush2.bf16.msra.mxu0 0
      %132 = vmatprep.subr.bf16.mxu0 0
      %133 = vmatpush2.bf16.msra.mxu0 0
      %134 = vmatprep.subr.bf16.mxu0 0
      %135 = vmatpush2.bf16.msra.mxu0 0
      %136 = vmatprep.subr.bf16.mxu0 0
      %137 = vmatpush2.bf16.msra.mxu0 0
      %138 = vmatprep.mubr.bf16.mxu0 0
      %139 = vmatmul.mubr.bf16.gmra.mxu0 %v104
      %v140 = vpop.f32.mrf.mxu0
      %v141 = vadd.f32 %v94, %v140
      %v142 = vpop.f32.mrf.mxu0
      %v143 = vpop.f32.mrf.mxu0
      %v144 = vpop.f32.mrf.mxu0
      %145 = vdwg.mxu0
      %v146 = vmax.f32 %v141, 0.0
      %v147 = vpack.c.bf16 %v146, %v146
      %v148 = vld [vmem:[#allocation8] sm:$0xf]
      %v149 = vld [vmem:[#allocation8 + $0x4] sm:$0xf]
      %v150 = vld [vmem:[#allocation8 + $0x8] sm:$0xf]
      %v151 = vld [vmem:[#allocation8 + $0xc] sm:$0xf]
      %v152 = vld [vmem:[%s4] sm:$0x1]
      %v154 = vlaneseq
      %v155 = vshrl.u32 %v154, 7
      %v156 = vsub.s32 0, %v155
      %v157 = vrot.slane %v152, %v156
      %v163 = vunpack.c.l.b16 %v148
      %v164 = vunpack.c.l.b16 %v149
      %v165 = vunpack.c.l.b16 %v150
      %v166 = vunpack.c.l.b16 %v151
      %v167 = vpack.c.b16 %v164, %v163
      %v168 = vpack.c.b16 %v166, %v165
      %vm171 = vcmask 261120
      %v173 = vsel %vm171, %v147, 0
      %175 = vmatprep.subr.bf16.mxu0 0
      %176 = vmatpush1.bf16.msra.mxu0 0
      %177 = vmatprep.subr.bf16.mxu0 0
      %178 = vmatpush1.bf16.msra.mxu0 0
      %179 = vmatprep.subr.bf16.mxu0 0
      %180 = vmatpush1.bf16.msra.mxu0 0
      %181 = vmatprep.subr.bf16.mxu0 0
      %182 = vmatpush1.bf16.msra.mxu0 0
      %183 = vmatprep.subr.bf16.mxu0 0
      %184 = vmatpush1.bf16.msra.mxu0 0
      %185 = vmatprep.subr.bf16.mxu0 0
      %186 = vmatpush1.bf16.msra.mxu0 0
      %187 = vmatprep.subr.bf16.mxu0 0
      %188 = vmatpush1.bf16.msra.mxu0 %v168
      %189 = vmatprep.subr.bf16.mxu0 0
      %190 = vmatpush1.bf16.msra.mxu0 %v167
      %191 = vmatprep.subr.bf16.mxu0 0
      %192 = vmatpush2.bf16.msra.mxu0 0
      %193 = vmatprep.subr.bf16.mxu0 0
      %194 = vmatpush2.bf16.msra.mxu0 0
      %195 = vmatprep.subr.bf16.mxu0 0
      %196 = vmatpush2.bf16.msra.mxu0 0
      %197 = vmatprep.subr.bf16.mxu0 0
      %198 = vmatpush2.bf16.msra.mxu0 0
      %199 = vmatprep.subr.bf16.mxu0 0
      %200 = vmatpush2.bf16.msra.mxu0 0
      %201 = vmatprep.subr.bf16.mxu0 0
      %202 = vmatpush2.bf16.msra.mxu0 0
      %203 = vmatprep.subr.bf16.mxu0 0
      %204 = vmatpush2.bf16.msra.mxu0 0
      %205 = vmatprep.subr.bf16.mxu0 0
      %206 = vmatpush2.bf16.msra.mxu0 0
      %207 = vmatprep.mubr.bf16.mxu0 0
      %208 = vmatmul.mubr.bf16.gmra.mxu0 %v173
      %v209 = vpop.f32.mrf.mxu0
      %v210 = vadd.f32 %v157, %v209
      %v211 = vpop.f32.mrf.mxu0
      %v212 = vpop.f32.mrf.mxu0
      %v213 = vpop.f32.mrf.mxu0
      %214 = vdwg.mxu0
      %v215 = vmax.f32 %v210, 0.0
      %v216 = vpack.c.bf16 %v215, %v215
      %vm217 = vcmask 519168
      %218 = vst.msk [vmem:[#allocation2] sm:$0xf] %vm217, %v216
    $region49: #{tpu_custom_call.1} parent=1 // pred_fallthru
      _
    %v219 = vld [vmem:[#allocation2] sm:$0xf]
    %v220 = vld [vmem:[#allocation9] sm:$0xf]
    %v221 = vld [vmem:[#allocation9 + $0x4] sm:$0xf]
    %v222 = vld [vmem:[#allocation9 + $0x8] sm:$0xf]
    %v223 = vld [vmem:[#allocation9 + $0xc] sm:$0xf]
    %v224 = vld [vmem:[#allocation9 + $0x10] sm:$0xf]
    %v225 = vld [vmem:[#allocation9 + $0x14] sm:$0xf]
    %v226 = vld [vmem:[#allocation9 + $0x18] sm:$0xf]
    %v227 = vld [vmem:[#allocation9 + $0x1c] sm:$0xf]
    %v228 = vld [vmem:[%s6] sm:$0x1]
    %v230 = vlaneseq
    %v231 = vshrl.u32 %v230, 7
    %v232 = vsub.s32 0, %v231
    %v233 = vrot.slane %v228, %v232
    %v243 = vunpack.c.l.b16 %v220
    %v244 = vunpack.c.l.b16 %v221
    %v245 = vunpack.c.l.b16 %v222
    %v246 = vunpack.c.l.b16 %v223
    %v247 = vunpack.c.l.b16 %v224
    %v248 = vunpack.c.l.b16 %v225
    %v249 = vunpack.c.l.b16 %v226
    %v250 = vunpack.c.l.b16 %v227
    %v251 = vpack.c.b16 %v244, %v243
    %v252 = vpack.c.b16 %v246, %v245
    %v253 = vpack.c.b16 %v248, %v247
    %v254 = vpack.c.b16 %v250, %v249
    %vm259 = vcmask 523264
    %v261 = vsel %vm259, %v219, 0
    %263 = vmatprep.subr.bf16.mxu0 0
    %264 = vmatpush1.bf16.msra.mxu0 0
    %265 = vmatprep.subr.bf16.mxu0 0
    %266 = vmatpush1.bf16.msra.mxu0 0
    %267 = vmatprep.subr.bf16.mxu0 0
    %268 = vmatpush1.bf16.msra.mxu0 0
    %269 = vmatprep.subr.bf16.mxu0 0
    %270 = vmatpush1.bf16.msra.mxu0 0
    %271 = vmatprep.subr.bf16.mxu0 0
    %272 = vmatpush1.bf16.msra.mxu0 %v254
    %273 = vmatprep.subr.bf16.mxu0 0
    %274 = vmatpush1.bf16.msra.mxu0 %v253
    %275 = vmatprep.subr.bf16.mxu0 0
    %276 = vmatpush1.bf16.msra.mxu0 %v252
    %277 = vmatprep.subr.bf16.mxu0 0
    %278 = vmatpush1.bf16.msra.mxu0 %v251
    %279 = vmatprep.subr.bf16.mxu0 0
    %280 = vmatpush2.bf16.msra.mxu0 0
    %281 = vmatprep.subr.bf16.mxu0 0
    %282 = vmatpush2.bf16.msra.mxu0 0
    %283 = vmatprep.subr.bf16.mxu0 0
    %284 = vmatpush2.bf16.msra.mxu0 0
    %285 = vmatprep.subr.bf16.mxu0 0
    %286 = vmatpush2.bf16.msra.mxu0 0
    %287 = vmatprep.subr.bf16.mxu0 0
    %288 = vmatpush2.bf16.msra.mxu0 0
    %289 = vmatprep.subr.bf16.mxu0 0
    %290 = vmatpush2.bf16.msra.mxu0 0
    %291 = vmatprep.subr.bf16.mxu0 0
    %292 = vmatpush2.bf16.msra.mxu0 0
    %293 = vmatprep.subr.bf16.mxu0 0
    %294 = vmatpush2.bf16.msra.mxu0 0
    %295 = vmatprep.mubr.bf16.mxu0 0
    %296 = vmatmul.mubr.bf16.gmra.mxu0 %v261
    %v297 = vpop.f32.mrf.mxu0
    %v298 = vadd.f32 %v233, %v297
    %v299 = vpop.f32.mrf.mxu0
    %v300 = vpop.f32.mrf.mxu0
    %v301 = vpop.f32.mrf.mxu0
    %302 = vdwg.mxu0
    %v303 = vxor.u32 %v298, 2147483648
    %v304 = vmul.f32 %v303, 1.442695
    %v305 = vpow.pop %v304
    %v306 = vadd.f32 %v305, 1.0
    %v307 = vrcp.pop %v306
    %v308 = vmul.f32 1.0, %v307
    %309 = vst [vmem:[#allocation11] sm:$0xff] %v308
    // Predicated region
    $region50: #{tpu_custom_call.1} parent=1 // pred_check
      _
    $region51: #{tpu_custom_call.1} parent=1 // pred_check_branch
      %311 = sbr.rel (0) target = $region53
    $region52: #{tpu_custom_call.1} parent=1 // pred_region
      %s313 = ssub.s32 128, 128
      %314 = vsyncadd [#allocation5], %s313
      %s316 = sshll.u32 [#allocation11], 4
      %s317 = int_to_ptr.vmem [resolvable:$true] %s316
      %319 = dma.vmem_to_hbm [thread:$0]  %s317, 128, %s7, [#allocation5]
    $region53: #{tpu_custom_call.1} parent=1 // pred_fallthru
      _
    // Predicated region
    $region54: #{tpu_custom_call.1} parent=1 // pred_check
      _
    $region55: #{tpu_custom_call.1} parent=1 // pred_check_branch
      %321 = sbr.rel (0) target = $region57
    $region56: #{tpu_custom_call.1} parent=1 // pred_region
      %322 = dma.done [#allocation5], 128
    $region57: #{tpu_custom_call.1} parent=1 // pred_fallthru
      _
    %323 = vsyncpa [#allocation4], 1
    %324 = vsyncpa [#allocation7], 1
    %325 = vsyncpa [#allocation10], 1
    %326 = vsyncpa [#allocation5], 1

</llo_original>
